<compile_context>
chip_gen: v6e
topology: v6e:2x2x1
jax: 0.10.0
libtpu: 0.0.40
codegen_flags: <defaults>
</compile_context>

<pallas_src>
import functools

import jax
import jax.numpy as jnp
from jax import lax
from jax.experimental import pallas as pl
from jax.experimental.pallas import tpu as pltpu

BN_EPS = 1e-5
NEG_BIG = -1e30  # bias for padded logit columns -> softmax ~0 there


# ----------------------------------------------------------------------------
# Helpers
# ----------------------------------------------------------------------------

def _round_up(n, m=128):
    return ((n + m - 1) // m) * m


def _vmem_capacity_bytes():
    try:
        return int(pltpu.get_tpu_info().vmem_capacity_bytes)
    except Exception:
        return 64 << 20          # conservative fallback (v7x per-core VMEM)


def _vmem_limit_bytes(need, cap):
    # Per-generation ceiling: ~56 MiB on v7x (64 MiB VMEM), ~112 MiB on v5e/v6e.
    return int(min(max(need, 16 << 20), (cap * 7) // 8))


def _pick_chunk(d):
    """Lane-dense N-chunk width for the streamed weight path."""
    for c in (512, 256, 128):
        if d % c == 0:
            return c
    return 128


def _batchnorm_train(x, gamma, beta, inv_b):
    """BatchNorm1d, training mode, biased variance, two-pass statistics."""
    mean = jnp.sum(x, axis=0, keepdims=True) * inv_b
    xc = x - mean
    var = jnp.sum(xc * xc, axis=0, keepdims=True) * inv_b
    scale = gamma * lax.rsqrt(var + BN_EPS)
    return xc * scale + beta


def _head_softmax(x, w_head, b_head):
    """Output Linear + numerically-stable softmax over dim=1 (lane axis)."""
    logits = jnp.dot(x.astype(jnp.bfloat16), w_head,
                     preferred_element_type=jnp.float32) + b_head
    m = jnp.max(logits, axis=1, keepdims=True)
    e = jnp.exp(logits - m)
    denom = jnp.sum(e, axis=1, keepdims=True)
    # approx reciprocal goes to the EUP slot; rows sum to 1 within ~1e-3.
    return e * pl.reciprocal(denom, approx=True)


# ----------------------------------------------------------------------------
# Kernels
# ----------------------------------------------------------------------------

def _acann_resident_kernel(n_hidden, x_ref, wh_ref, bh_ref, g_ref, bt_ref,
                           whead_ref, bhead_ref, out_ref):
    """All weights resident in VMEM (small nets): no DMA machinery at all.

    x_ref:     (B, D)            f32   VMEM
    wh_ref:    (n_hidden, D, D)  bf16  VMEM
    bh_ref:    (n_hidden, 1, D)  f32   VMEM
    g_ref:     (n_hidden, 1, D)  f32   VMEM   (gamma, 0 in padded lanes)
    bt_ref:    (n_hidden, 1, D)  f32   VMEM   (beta)
    whead_ref: (D, d_out)        bf16  VMEM
    bhead_ref: (1, d_out)        f32   VMEM   (NEG_BIG in padded columns)
    out_ref:   (B, d_out)        f32   VMEM
    """
    batch = x_ref.shape[0]
    inv_b = 1.0 / float(batch)

    x = x_ref[...]
    for l in range(n_hidden):
        xn = _batchnorm_train(x, g_ref[l], bt_ref[l], inv_b).astype(jnp.bfloat16)
        y = jnp.dot(xn, wh_ref[l], preferred_element_type=jnp.float32) + bh_ref[l]
        x = jnp.maximum(y, 0.0)
    out_ref[...] = _head_softmax(x, whead_ref[...], bhead_ref[...])


def _acann_stream_kernel(n_hidden, n_chunk, x_ref, wh_hbm, bh_ref, g_ref,
                         bt_ref, whead_ref, bhead_ref, out_ref, wbuf, sem):
    """Hidden weights streamed from HBM in N-chunks through a 2-slot buffer.

    wh_hbm: (n_hidden, D, D) bf16 in HBM (memory_space=pl.ANY)
    wbuf:   (2, D, n_chunk)  bf16 VMEM scratch (double buffer)
    sem:    DMA semaphores, shape (2,)
    The small head weight stays VMEM-resident (it is never padded to D x D).
    """
    batch, d = x_ref.shape
    inv_b = 1.0 / float(batch)
    n_chunks = d // n_chunk
    total = n_hidden * n_chunks

    def dma(step):
        l, c = divmod(step, n_chunks)          # static Python ints (unrolled)
        slot = step % 2
        return pltpu.make_async_copy(
            wh_hbm.at[l, :, pl.ds(c * n_chunk, n_chunk)],
            wbuf.at[slot], sem.at[slot])

    # Prime the pipeline with the first chunk (only D*n_chunk bytes exposed).
    dma(0).start()

    x = x_ref[...]
    for l in range(n_hidden):
        xn = _batchnorm_train(x, g_ref[l], bt_ref[l], inv_b).astype(jnp.bfloat16)
        parts = []
        for c in range(n_chunks):
            step = l * n_chunks + c
            slot = step % 2
            dma(step).wait()
            # Prefetch the next chunk while this one runs on the MXU.
            # NOTE (WAR hazard): the prefetch for step+1 overwrites the slot the
            # dot at step-1 read from; this is safe only because that dot's
            # vector loads are issued earlier in program order (ref effect
            # ordering) — keep wait-before-reuse ordering if restructuring.
            if step + 1 < total:
                dma(step + 1).start()
            parts.append(jnp.dot(xn, wbuf[slot],
                                 preferred_element_type=jnp.float32))
        y = parts[0] if n_chunks == 1 else jnp.concatenate(parts, axis=1)
        x = jnp.maximum(y + bh_ref[l], 0.0)

    out_ref[...] = _head_softmax(x, whead_ref[...], bhead_ref[...])


# ----------------------------------------------------------------------------
# Packing + wrapper
# ----------------------------------------------------------------------------

def prepare_acann_params(input_size, hidden_layers, output_size,
                         hidden_params, out_params):
    """One-time packing of PyTorch-layout parameters into kernel layout.

    hidden_params: list of (gamma[in], beta[in], W[out, in], b[out]) per layer.
    out_params:    (W_out[out, in], b_out[out]).
    """
    n_hidden = len(hidden_layers)
    dims = [input_size] + list(hidden_layers)
    d = max(_round_up(v) for v in dims)          # uniform lane width, hidden part
    d_out = _round_up(output_size)               # head width (kept small)

    w_hidden = jnp.zeros((n_hidden, d, d), jnp.float32)
    b_hidden = jnp.zeros((n_hidden, 1, d), jnp.float32)
    gamma_all = jnp.zeros((n_hidden, 1, d), jnp.float32)   # 0 in padded lanes
    beta_all = jnp.zeros((n_hidden, 1, d), jnp.float32)

    for l, (gamma, beta, w, b) in enumerate(hidden_params):
        fo, fi = w.shape
        w_hidden = w_hidden.at[l, :fi, :fo].set(w.T)        # [in, out]
        b_hidden = b_hidden.at[l, 0, :fo].set(b)
        gamma_all = gamma_all.at[l, 0, :fi].set(gamma)
        beta_all = beta_all.at[l, 0, :fi].set(beta)

    w_out, b_out = out_params
    fo, fi = w_out.shape
    w_head = jnp.zeros((d, d_out), jnp.float32).at[:fi, :fo].set(w_out.T)
    # Padded logit columns: huge negative bias so softmax assigns them ~0.
    b_head = jnp.full((1, d_out), NEG_BIG, jnp.float32).at[0, :fo].set(b_out)

    return dict(
        n_hidden=n_hidden, d=d, d_out=d_out,
        input_size=input_size, output_size=output_size,
        w_hidden=w_hidden.astype(jnp.bfloat16),
        b_hidden=b_hidden, gamma=gamma_all, beta=beta_all,
        w_head=w_head.astype(jnp.bfloat16), b_head=b_head,
    )


def acann_forward(x, packed, *, force_stream=False, force_chunk=None):
    """x: (batch, input_size). Returns (batch, output_size) softmax probs."""
    batch = x.shape[0]
    d, d_out = packed["d"], packed["d_out"]
    n_hidden = packed["n_hidden"]

    # Lane-pad the activation once (zeros are BN/matmul-neutral; gamma=0 in
    # padded lanes keeps them exactly zero through every layer).
    x_pad = jnp.pad(x.astype(jnp.float32), ((0, 0), (0, d - x.shape[1])))

    cap = _vmem_capacity_bytes()
    hidden_w_bytes = n_hidden * d * d * 2
    head_bytes = d * d_out * 2
    # Adaptive residency budget (review): ~24 MiB on v7x, ~48 MiB on v5e/v6e.
    resident_budget = (24 << 20) if cap <= (64 << 20) else (48 << 20)
    resident = (not force_stream) and (hidden_w_bytes + head_bytes <= resident_budget)

    vmem_spec = pl.BlockSpec(memory_space=pltpu.MemorySpace.VMEM)
    small_bytes = (3 * n_hidden * d + d_out) * 4 + head_bytes
    act_bytes = batch * (d + d_out) * 4

    if resident:
        kernel = functools.partial(_acann_resident_kernel, n_hidden)
        wh_spec = vmem_spec
        scratch_shapes = []
        need = 2 * (act_bytes + small_bytes) + hidden_w_bytes + (4 << 20)
    else:
        n_chunk = force_chunk if force_chunk is not None else _pick_chunk(d)
        if d % n_chunk != 0 or n_chunk % 128 != 0:
            raise ValueError("chunk width must be a lane-dense divisor of d")
        kernel = functools.partial(_acann_stream_kernel, n_hidden, n_chunk)
        wh_spec = pl.BlockSpec(memory_space=pl.ANY)          # stays in HBM
        scratch_shapes = [
            pltpu.VMEM((2, d, n_chunk), jnp.bfloat16),       # chunk double buffer
            pltpu.SemaphoreType.DMA((2,)),
        ]
        need = 2 * (act_bytes + small_bytes) + 2 * d * n_chunk * 2 + (4 << 20)

    out = pl.pallas_call(
        kernel,
        out_shape=jax.ShapeDtypeStruct((batch, d_out), jnp.float32),
        in_specs=[
            vmem_spec,   # x
            wh_spec,     # stacked hidden weights (VMEM resident or HBM stream)
            vmem_spec,   # hidden biases
            vmem_spec,   # gammas
            vmem_spec,   # betas
            vmem_spec,   # head weight
            vmem_spec,   # head bias
        ],
        out_specs=vmem_spec,
        scratch_shapes=scratch_shapes,
        compiler_params=pltpu.CompilerParams(
            vmem_limit_bytes=_vmem_limit_bytes(need, cap)),
    )(x_pad, packed["w_hidden"], packed["b_hidden"], packed["gamma"],
      packed["beta"], packed["w_head"], packed["b_head"])

    return out[:, : packed["output_size"]]


# ----------------------------------------------------------------------------
# References and test harness
# ----------------------------------------------------------------------------

def _init_linear(key, fan_in, fan_out):
    """PyTorch nn.Linear default init: U(-1/sqrt(fan_in), 1/sqrt(fan_in))."""
    kw, kb = jax.random.split(key)
    bound = 1.0 / (fan_in ** 0.5)
    w = jax.random.uniform(kw, (fan_out, fan_in), jnp.float32, -bound, bound)
    b = jax.random.uniform(kb, (fan_out,), jnp.float32, -bound, bound)
    return w, b


def _reference_forward(x, hidden_params, out_params):
    """Pure-f32 reference with exact PyTorch forward semantics."""
    h = x.astype(jnp.float32)
    for gamma, beta, w, b in hidden_params:
        mean = jnp.mean(h, axis=0, keepdims=True)
        var = jnp.mean((h - mean) ** 2, axis=0, keepdims=True)
        hn = (h - mean) / jnp.sqrt(var + BN_EPS) * gamma + beta
        h = jax.nn.relu(hn @ w.T + b)
    w_out, b_out = out_params
    return jax.nn.softmax(h @ w_out.T + b_out, axis=1)


def _reference_forward_matched(x, hidden_params, out_params):
    """Reference with the same arithmetic choices as the kernel
    (two-pass stats, bf16 matmul operands, f32 accumulation)."""
    h = x.astype(jnp.float32)
    bsz = x.shape[0]
    for gamma, beta, w, b in hidden_params:
        mean = jnp.sum(h, axis=0, keepdims=True) / bsz
        hc = h - mean
        var = jnp.sum(hc * hc, axis=0, keepdims=True) / bsz
        hn = hc * (gamma * lax.rsqrt(var + BN_EPS)) + beta
        y = jnp.dot(hn.astype(jnp.bfloat16), w.T.astype(jnp.bfloat16),
                    preferred_element_type=jnp.float32) + b
        h = jnp.maximum(y, 0.0)
    w_out, b_out = out_params
    logits = jnp.dot(h.astype(jnp.bfloat16), w_out.T.astype(jnp.bfloat16),
                     preferred_element_type=jnp.float32) + b_out
    return jax.nn.softmax(logits, axis=1)


def _build_params(key, input_size, hidden_layers, output_size):
    hidden_params = []
    sizes = [input_size] + list(hidden_layers)
    for fan_in, fan_out in zip(sizes[:-1], sizes[1:]):
        key, kl, kg, kb = jax.random.split(key, 4)
        w, b = _init_linear(kl, fan_in, fan_out)
        gamma = 1.0 + 0.1 * jax.random.normal(kg, (fan_in,), jnp.float32)
        beta = 0.1 * jax.random.normal(kb, (fan_in,), jnp.float32)
        hidden_params.append((gamma, beta, w, b))
    key, ko = jax.random.split(key)
    out_params = _init_linear(ko, hidden_layers[-1], output_size)
    return key, hidden_params, out_params


def _run_and_check(name, x, hidden_params, out_params, input_size,
                   hidden_layers, output_size, force_stream, force_chunk):
    packed = prepare_acann_params(input_size, hidden_layers, output_size,
                                  hidden_params, out_params)
    fwd = jax.jit(lambda xv: acann_forward(xv, packed,
                                           force_stream=force_stream,
                                           force_chunk=force_chunk))
    out = jax.block_until_ready(fwd(x))

    ref_f32 = _reference_forward(x, hidden_params, out_params)
    ref_match = _reference_forward_matched(x, hidden_params, out_params)

    assert out.shape == (x.shape[0], output_size), f"{name}: bad output shape"
    assert jnp.allclose(out, ref_match, atol=1e-2, rtol=5e-3), (
        f"{name}: mismatch vs matched-precision reference")
    assert jnp.allclose(out, ref_f32, atol=5e-2), (
        f"{name}: mismatch vs f32 reference")
    assert jnp.allclose(jnp.sum(out, axis=1), 1.0, atol=5e-3), (
        f"{name}: rows not normalized")
    return out


if __name__ == "__main__":
    key = jax.random.PRNGKey(0)

    # Config A: small net -> adaptive residency keeps all weights in VMEM
    # (no DMA machinery at all on this path).
    key, kx = jax.random.split(key)
    x_a = jax.random.normal(kx, (8, 16), jnp.float32)
    key, hp_a, op_a = _build_params(key, 16, [32, 32], 8)
    _run_and_check("resident", x_a, hp_a, op_a,
                   input_size=16, hidden_layers=[32, 32], output_size=8,
                   force_stream=False, force_chunk=None)

    # Config B: force the chunked double-buffered HBM weight stream
    # (D=256, chunk=128 -> 2 chunks per hidden layer) so that path is
    # exercised and verified too, including non-trivial padding.
    key, kx = jax.random.split(key)
    x_b = jax.random.normal(kx, (8, 200), jnp.float32)
    key, hp_b, op_b = _build_params(key, 200, [256, 130], 10)
    _run_and_check("stream", x_b, hp_b, op_b,
                   input_size=200, hidden_layers=[256, 130], output_size=10,
                   force_stream=True, force_chunk=128)

    print("KERNEL_OK")
</pallas_src>

<mosaic_0001>
module attributes {stable_mosaic.version = 11 : i64} {
  func.func @_acann_resident_kernel(%arg0: memref<8x128xf32, #tpu.memory_space<vmem>>, %arg1: memref<2x128x128xbf16, #tpu.memory_space<vmem>>, %arg2: memref<2x1x128xf32, #tpu.memory_space<vmem>>, %arg3: memref<2x1x128xf32, #tpu.memory_space<vmem>>, %arg4: memref<2x1x128xf32, #tpu.memory_space<vmem>>, %arg5: memref<128x128xbf16, #tpu.memory_space<vmem>>, %arg6: memref<1x128xf32, #tpu.memory_space<vmem>>, %arg7: memref<8x128xf32, #tpu.memory_space<vmem>>) attributes {dimension_semantics = [], scalar_prefetch = 0 : i64, scratch_operands = 0 : i64, tpu.core_type = #tpu.core_type<tc>} {
    %c0 = arith.constant 0 : index
    %c0_0 = arith.constant 0 : index
    %0 = vector.load %arg0[%c0, %c0_0] : memref<8x128xf32, #tpu.memory_space<vmem>>, vector<8x128xf32>
    %c0_1 = arith.constant 0 : index
    %c0_2 = arith.constant 0 : index
    %c0_3 = arith.constant 0 : index
    %1 = vector.load %arg3[%c0_1, %c0_2, %c0_3] : memref<2x1x128xf32, #tpu.memory_space<vmem>>, vector<1x1x128xf32>
    %2 = vector.shape_cast %1 : vector<1x1x128xf32> to vector<1x128xf32>
    %c0_4 = arith.constant 0 : index
    %c0_5 = arith.constant 0 : index
    %c0_6 = arith.constant 0 : index
    %3 = vector.load %arg4[%c0_4, %c0_5, %c0_6] : memref<2x1x128xf32, #tpu.memory_space<vmem>>, vector<1x1x128xf32>
    %4 = vector.shape_cast %3 : vector<1x1x128xf32> to vector<1x128xf32>
    %cst = arith.constant dense<0.000000e+00> : vector<128xf32>
    %5 = vector.multi_reduction <add>, %0, %cst [0] : vector<8x128xf32> to vector<128xf32>
    %6 = vector.shape_cast %5 : vector<128xf32> to vector<1x128xf32>
    %cst_7 = arith.constant 1.250000e-01 : f32
    %7 = vector.broadcast %cst_7 : f32 to vector<1x128xf32>
    %8 = arith.mulf %6, %7 : vector<1x128xf32>
    %9 = vector.broadcast %8 : vector<1x128xf32> to vector<8x128xf32>
    %10 = arith.subf %0, %9 : vector<8x128xf32>
    %11 = arith.mulf %10, %10 : vector<8x128xf32>
    %cst_8 = arith.constant dense<0.000000e+00> : vector<128xf32>
    %12 = vector.multi_reduction <add>, %11, %cst_8 [0] : vector<8x128xf32> to vector<128xf32>
    %13 = vector.shape_cast %12 : vector<128xf32> to vector<1x128xf32>
    %cst_9 = arith.constant 1.250000e-01 : f32
    %14 = vector.broadcast %cst_9 : f32 to vector<1x128xf32>
    %15 = arith.mulf %13, %14 : vector<1x128xf32>
    %cst_10 = arith.constant 9.99999974E-6 : f32
    %16 = vector.broadcast %cst_10 : f32 to vector<1x128xf32>
    %17 = arith.addf %15, %16 : vector<1x128xf32>
    %18 = math.rsqrt %17 : vector<1x128xf32>
    %19 = arith.mulf %2, %18 : vector<1x128xf32>
    %20 = vector.broadcast %19 : vector<1x128xf32> to vector<8x128xf32>
    %21 = arith.mulf %10, %20 : vector<8x128xf32>
    %22 = vector.broadcast %4 : vector<1x128xf32> to vector<8x128xf32>
    %23 = arith.addf %21, %22 : vector<8x128xf32>
    %24 = arith.truncf %23 : vector<8x128xf32> to vector<8x128xbf16>
    %c0_11 = arith.constant 0 : index
    %c0_12 = arith.constant 0 : index
    %c0_13 = arith.constant 0 : index
    %25 = vector.load %arg1[%c0_11, %c0_12, %c0_13] : memref<2x128x128xbf16, #tpu.memory_space<vmem>>, vector<1x128x128xbf16>
    %26 = vector.shape_cast %25 : vector<1x128x128xbf16> to vector<128x128xbf16>
    %cst_14 = arith.constant dense<0.000000e+00> : vector<8x128xf32>
    %27 = tpu.matmul %24, %26, %cst_14 {dimension_numbers = #tpu.dot_dimension_numbers<[1], [0], [0], [1], [0, 0, 1, 1], [], []>} : vector<8x128xbf16>, vector<128x128xbf16>, vector<8x128xf32> -> vector<8x128xf32>
    %c0_15 = arith.constant 0 : index
    %c0_16 = arith.constant 0 : index
    %c0_17 = arith.constant 0 : index
    %28 = vector.load %arg2[%c0_15, %c0_16, %c0_17] : memref<2x1x128xf32, #tpu.memory_space<vmem>>, vector<1x1x128xf32>
    %29 = vector.shape_cast %28 : vector<1x1x128xf32> to vector<1x128xf32>
    %30 = vector.broadcast %29 : vector<1x128xf32> to vector<8x128xf32>
    %31 = arith.addf %27, %30 : vector<8x128xf32>
    %cst_18 = arith.constant 0.000000e+00 : f32
    %32 = vector.broadcast %cst_18 : f32 to vector<8x128xf32>
    %33 = arith.maximumf %31, %32 : vector<8x128xf32>
    %c1 = arith.constant 1 : index
    %c0_19 = arith.constant 0 : index
    %c0_20 = arith.constant 0 : index
    %34 = vector.load %arg3[%c1, %c0_19, %c0_20] : memref<2x1x128xf32, #tpu.memory_space<vmem>>, vector<1x1x128xf32>
    %35 = vector.shape_cast %34 : vector<1x1x128xf32> to vector<1x128xf32>
    %c1_21 = arith.constant 1 : index
    %c0_22 = arith.constant 0 : index
    %c0_23 = arith.constant 0 : index
    %36 = vector.load %arg4[%c1_21, %c0_22, %c0_23] : memref<2x1x128xf32, #tpu.memory_space<vmem>>, vector<1x1x128xf32>
    %37 = vector.shape_cast %36 : vector<1x1x128xf32> to vector<1x128xf32>
    %cst_24 = arith.constant dense<0.000000e+00> : vector<128xf32>
    %38 = vector.multi_reduction <add>, %33, %cst_24 [0] : vector<8x128xf32> to vector<128xf32>
    %39 = vector.shape_cast %38 : vector<128xf32> to vector<1x128xf32>
    %cst_25 = arith.constant 1.250000e-01 : f32
    %40 = vector.broadcast %cst_25 : f32 to vector<1x128xf32>
    %41 = arith.mulf %39, %40 : vector<1x128xf32>
    %42 = vector.broadcast %41 : vector<1x128xf32> to vector<8x128xf32>
    %43 = arith.subf %33, %42 : vector<8x128xf32>
    %44 = arith.mulf %43, %43 : vector<8x128xf32>
    %cst_26 = arith.constant dense<0.000000e+00> : vector<128xf32>
    %45 = vector.multi_reduction <add>, %44, %cst_26 [0] : vector<8x128xf32> to vector<128xf32>
    %46 = vector.shape_cast %45 : vector<128xf32> to vector<1x128xf32>
    %cst_27 = arith.constant 1.250000e-01 : f32
    %47 = vector.broadcast %cst_27 : f32 to vector<1x128xf32>
    %48 = arith.mulf %46, %47 : vector<1x128xf32>
    %cst_28 = arith.constant 9.99999974E-6 : f32
    %49 = vector.broadcast %cst_28 : f32 to vector<1x128xf32>
    %50 = arith.addf %48, %49 : vector<1x128xf32>
    %51 = math.rsqrt %50 : vector<1x128xf32>
    %52 = arith.mulf %35, %51 : vector<1x128xf32>
    %53 = vector.broadcast %52 : vector<1x128xf32> to vector<8x128xf32>
    %54 = arith.mulf %43, %53 : vector<8x128xf32>
    %55 = vector.broadcast %37 : vector<1x128xf32> to vector<8x128xf32>
    %56 = arith.addf %54, %55 : vector<8x128xf32>
    %57 = arith.truncf %56 : vector<8x128xf32> to vector<8x128xbf16>
    %c1_29 = arith.constant 1 : index
    %c0_30 = arith.constant 0 : index
    %c0_31 = arith.constant 0 : index
    %58 = vector.load %arg1[%c1_29, %c0_30, %c0_31] : memref<2x128x128xbf16, #tpu.memory_space<vmem>>, vector<1x128x128xbf16>
    %59 = vector.shape_cast %58 : vector<1x128x128xbf16> to vector<128x128xbf16>
    %cst_32 = arith.constant dense<0.000000e+00> : vector<8x128xf32>
    %60 = tpu.matmul %57, %59, %cst_32 {dimension_numbers = #tpu.dot_dimension_numbers<[1], [0], [0], [1], [0, 0, 1, 1], [], []>} : vector<8x128xbf16>, vector<128x128xbf16>, vector<8x128xf32> -> vector<8x128xf32>
    %c1_33 = arith.constant 1 : index
    %c0_34 = arith.constant 0 : index
    %c0_35 = arith.constant 0 : index
    %61 = vector.load %arg2[%c1_33, %c0_34, %c0_35] : memref<2x1x128xf32, #tpu.memory_space<vmem>>, vector<1x1x128xf32>
    %62 = vector.shape_cast %61 : vector<1x1x128xf32> to vector<1x128xf32>
    %63 = vector.broadcast %62 : vector<1x128xf32> to vector<8x128xf32>
    %64 = arith.addf %60, %63 : vector<8x128xf32>
    %cst_36 = arith.constant 0.000000e+00 : f32
    %65 = vector.broadcast %cst_36 : f32 to vector<8x128xf32>
    %66 = arith.maximumf %64, %65 : vector<8x128xf32>
    %c0_37 = arith.constant 0 : index
    %c0_38 = arith.constant 0 : index
    %67 = vector.load %arg5[%c0_37, %c0_38] : memref<128x128xbf16, #tpu.memory_space<vmem>>, vector<128x128xbf16>
    %c0_39 = arith.constant 0 : index
    %c0_40 = arith.constant 0 : index
    %68 = vector.load %arg6[%c0_39, %c0_40] : memref<1x128xf32, #tpu.memory_space<vmem>>, vector<1x128xf32>
    %69 = arith.truncf %66 : vector<8x128xf32> to vector<8x128xbf16>
    %cst_41 = arith.constant dense<0.000000e+00> : vector<8x128xf32>
    %70 = tpu.matmul %69, %67, %cst_41 {dimension_numbers = #tpu.dot_dimension_numbers<[1], [0], [0], [1], [0, 0, 1, 1], [], []>} : vector<8x128xbf16>, vector<128x128xbf16>, vector<8x128xf32> -> vector<8x128xf32>
    %71 = vector.broadcast %68 : vector<1x128xf32> to vector<8x128xf32>
    %72 = arith.addf %70, %71 : vector<8x128xf32>
    %cst_42 = arith.constant dense<0xFF800000> : vector<8xf32>
    %73 = vector.multi_reduction <maximumf>, %72, %cst_42 [1] : vector<8x128xf32> to vector<8xf32>
    %74 = vector.shape_cast %73 : vector<8xf32> to vector<8x1xf32>
    %75 = vector.broadcast %74 : vector<8x1xf32> to vector<8x128xf32>
    %76 = arith.subf %72, %75 : vector<8x128xf32>
    %77 = math.exp %76 : vector<8x128xf32>
    %cst_43 = arith.constant dense<0.000000e+00> : vector<8xf32>
    %78 = vector.multi_reduction <add>, %77, %cst_43 [1] : vector<8x128xf32> to vector<8xf32>
    %79 = vector.shape_cast %78 : vector<8xf32> to vector<8x1xf32>
    %80 = tpu.reciprocal %79 {approx = true} : vector<8x1xf32> -> vector<8x1xf32>
    %81 = vector.broadcast %80 : vector<8x1xf32> to vector<8x128xf32>
    %82 = arith.mulf %77, %81 : vector<8x128xf32>
    %c0_44 = arith.constant 0 : index
    %c0_45 = arith.constant 0 : index
    %83 = vector.load %arg7[%c0_44, %c0_45] : memref<8x128xf32, #tpu.memory_space<vmem>>, vector<8x128xf32>
    tpu.vector_store %arg7[%c0_44, %c0_45], %82 {strides = array<i32>} : memref<8x128xf32, #tpu.memory_space<vmem>>, vector<8x128xf32>,
    return
  }
}

</mosaic_0001>

<llo_original>
// kernel: _lambda_.1
$region0: #{_lambda_.1}
  #allocation0 [shape = 'u32[]', space=smem, size = 0x4, offset = 0x4, fixed_abs, tag = 'smem constant byte address 0x4 - core index']
  #allocation1 [shape = 'u32[144,128]{1,0:T(1,128)}', space=vmem, size = 0x12000, scoped, tag = 'internal scratch']
  %s0 = inlined_call_operand.vmem [shape: f32[8,128], index: 0, kind: input, shape index: {}]
  %s1 = inlined_call_operand.hbm [shape: bf16[2,128,128], index: 1, kind: input, shape index: {}]
  %s2 = inlined_call_operand.vmem [shape: f32[2,1,128], index: 2, kind: input, shape index: {}]
  %s3 = inlined_call_operand.vmem [shape: f32[2,1,128], index: 3, kind: input, shape index: {}]
  %s4 = inlined_call_operand.vmem [shape: f32[2,1,128], index: 4, kind: input, shape index: {}]
  %s5 = inlined_call_operand.hbm [shape: bf16[128,128], index: 5, kind: input, shape index: {}]
  %s6 = inlined_call_operand.vmem [shape: f32[1,128], index: 6, kind: input, shape index: {}]
  %s7 = inlined_call_operand.hbm [shape: f32[8,128], index: 7, kind: output, shape index: {}]
  %s8 = sld [smem:[#allocation0]]
  $region46: #{_lambda_.1} parent=0
    _
  %s10 = ssub.s32 1, %s8
  %s11 = scalar_select 0, %s10, %s8
  $region1: #{_lambda_.1} parent=0
    #allocation2 [shape = 'u8[65536]{0}', space=vmem, size = 0x10000, scoped, tag = 'input window, operand 1, single buffered']
    #allocation3 [shape = 's32[1]{0}', space=sflag, size = 0x4, scoped, tag = 'scoped memory for _lambda_.1']
    #allocation4 [shape = 's32[1]{0}', space=sflag, size = 0x4, scoped, tag = 'scoped memory for _lambda_.1']
    #allocation5 [shape = 'u8[32768]{0}', space=vmem, size = 0x8000, scoped, tag = 'input window, operand 5, single buffered']
    #allocation6 [shape = 's32[1]{0}', space=sflag, size = 0x4, scoped, tag = 'scoped memory for _lambda_.1']
    #allocation7 [shape = 'u8[4096]{0}', space=vmem, size = 0x1000, scoped, tag = 'output window, operand 0, single buffered']
    %12 = vsyncpa [#allocation3], 0
    %13 = vsyncpa [#allocation6], 0
    %14 = vsyncpa [#allocation4], 0
    // Predicated region
    $region2: #{_lambda_.1} parent=1 // pred_check
      _
    $region3: #{_lambda_.1} parent=1 // pred_check_branch
      %16 = sbr.rel (0) target = $region5
    $region4: #{_lambda_.1} parent=1 // pred_region
      _
    $region5: #{_lambda_.1} parent=1 // pred_fallthru
      _
    // Predicated region
    $region6: #{_lambda_.1} parent=1 // pred_check
      _
    $region7: #{_lambda_.1} parent=1 // pred_check_branch
      %18 = sbr.rel (0) target = $region9
    $region8: #{_lambda_.1} parent=1 // pred_region
      %s20 = ssub.s32 2048, 2048
      %21 = vsyncadd [#allocation3], %s20
      %s22 = sshll.u32 [#allocation2], 4
      %s23 = int_to_ptr.vmem [resolvable:$true] %s22
      %28 = dma.hbm_to_vmem [thread:$0]  %s1, 2048, %s23, [#allocation3], 64, 64, 4
    $region9: #{_lambda_.1} parent=1 // pred_fallthru
      _
    // Predicated region
    $region10: #{_lambda_.1} parent=1 // pred_check
      _
    $region11: #{_lambda_.1} parent=1 // pred_check_branch
      %30 = sbr.rel (0) target = $region13
    $region12: #{_lambda_.1} parent=1 // pred_region
      _
    $region13: #{_lambda_.1} parent=1 // pred_fallthru
      _
    // Predicated region
    $region14: #{_lambda_.1} parent=1 // pred_check
      _
    $region15: #{_lambda_.1} parent=1 // pred_check_branch
      %32 = sbr.rel (0) target = $region17
    $region16: #{_lambda_.1} parent=1 // pred_region
      _
    $region17: #{_lambda_.1} parent=1 // pred_fallthru
      _
    // Predicated region
    $region18: #{_lambda_.1} parent=1 // pred_check
      _
    $region19: #{_lambda_.1} parent=1 // pred_check_branch
      %34 = sbr.rel (0) target = $region21
    $region20: #{_lambda_.1} parent=1 // pred_region
      _
    $region21: #{_lambda_.1} parent=1 // pred_fallthru
      _
    // Predicated region
    $region22: #{_lambda_.1} parent=1 // pred_check
      _
    $region23: #{_lambda_.1} parent=1 // pred_check_branch
      %36 = sbr.rel (0) target = $region25
    $region24: #{_lambda_.1} parent=1 // pred_region
      %s38 = ssub.s32 1024, 1024
      %39 = vsyncadd [#allocation6], %s38
      %s40 = sshll.u32 [#allocation5], 4
      %s41 = int_to_ptr.vmem [resolvable:$true] %s40
      %46 = dma.hbm_to_vmem [thread:$0]  %s5, 1024, %s41, [#allocation6], 64, 64, 4
    $region25: #{_lambda_.1} parent=1 // pred_fallthru
      _
    // Predicated region
    $region26: #{_lambda_.1} parent=1 // pred_check
      _
    $region27: #{_lambda_.1} parent=1 // pred_check_branch
      %48 = sbr.rel (0) target = $region29
    $region28: #{_lambda_.1} parent=1 // pred_region
      _
    $region29: #{_lambda_.1} parent=1 // pred_fallthru
      _
    // Predicated region
    $region30: #{_lambda_.1} parent=1 // pred_check
      _
    $region31: #{_lambda_.1} parent=1 // pred_check_branch
      %50 = sbr.rel (0) target = $region33
    $region32: #{_lambda_.1} parent=1 // pred_region
      %51 = dma.done [#allocation3], 2048
    $region33: #{_lambda_.1} parent=1 // pred_fallthru
      _
    // Predicated region
    $region34: #{_lambda_.1} parent=1 // pred_check
      _
    $region35: #{_lambda_.1} parent=1 // pred_check_branch
      %53 = sbr.rel (0) target = $region37
    $region36: #{_lambda_.1} parent=1 // pred_region
      %54 = dma.done [#allocation6], 1024
    $region37: #{_lambda_.1} parent=1 // pred_fallthru
      _
    %v56 = vld [vmem:[%s0] sm:$0xff]
    %v57 = vld [vmem:[%s3] sm:$0x1]
    %v58 = vld [vmem:[%s4] sm:$0x1]
    %v59 = vrot.slane %v56, 4
    %v60 = vadd.f32 %v56, %v59
    %v61 = vrot.slane %v60, 2
    %v62 = vadd.f32 %v60, %v61
    %v63 = vrot.slane %v62, 1
    %v64 = vadd.f32 %v62, %v63
    %v65 = vmul.f32 %v64, 0.125
    %v66 = vsub.f32 %v56, %v65
    %v67 = vmul.f32 %v66, %v66
    %v68 = vrot.slane %v67, 4
    %v69 = vadd.f32 %v67, %v68
    %v70 = vrot.slane %v69, 2
    %v71 = vadd.f32 %v69, %v70
    %v72 = vrot.slane %v71, 1
    %v73 = vadd.f32 %v71, %v72
    %v74 = vmul.f32 %v73, 0.125
    %v75 = vadd.f32 %v74, 1e-05
    %v76 = vrsqrt.pop %v75
    %v77 = vmul.f32 %v57, %v76
    %v79 = vlaneseq
    %v80 = vshrl.u32 %v79, 7
    %v81 = vsub.s32 0, %v80
    %v82 = vrot.slane %v77, %v81
    %v84 = vmul.f32 %v66, %v82
    %v86 = vlaneseq
    %v87 = vshrl.u32 %v86, 7
    %v88 = vsub.s32 0, %v87
    %v89 = vrot.slane %v58, %v88
    %v91 = vadd.f32 %v84, %v89
    %v92 = vpack.c.bf16 %v91, %v91
    %v93 = vld [vmem:[#allocation2] sm:$0xf]
    %v94 = vld [vmem:[#allocation2 + $0x4] sm:$0xf]
    %v95 = vld [vmem:[#allocation2 + $0x8] sm:$0xf]
    %v96 = vld [vmem:[#allocation2 + $0xc] sm:$0xf]
    %v97 = vld [vmem:[#allocation2 + $0x10] sm:$0xf]
    %v98 = vld [vmem:[#allocation2 + $0x14] sm:$0xf]
    %v99 = vld [vmem:[#allocation2 + $0x18] sm:$0xf]
    %v100 = vld [vmem:[#allocation2 + $0x1c] sm:$0xf]
    %v101 = vld [vmem:[#allocation2 + $0x20] sm:$0xf]
    %v102 = vld [vmem:[#allocation2 + $0x24] sm:$0xf]
    %v103 = vld [vmem:[#allocation2 + $0x28] sm:$0xf]
    %v104 = vld [vmem:[#allocation2 + $0x2c] sm:$0xf]
    %v105 = vld [vmem:[#allocation2 + $0x30] sm:$0xf]
    %v106 = vld [vmem:[#allocation2 + $0x34] sm:$0xf]
    %v107 = vld [vmem:[#allocation2 + $0x38] sm:$0xf]
    %v108 = vld [vmem:[#allocation2 + $0x3c] sm:$0xf]
    %v109 = vld [vmem:[%s2] sm:$0x1]
    %v111 = vlaneseq
    %v112 = vshrl.u32 %v111, 7
    %v113 = vsub.s32 0, %v112
    %v114 = vrot.slane %v109, %v113
    %v132 = vunpack.c.l.b16 %v93
    %v133 = vunpack.c.l.b16 %v94
    %v134 = vunpack.c.l.b16 %v95
    %v135 = vunpack.c.l.b16 %v96
    %v136 = vunpack.c.l.b16 %v97
    %v137 = vunpack.c.l.b16 %v98
    %v138 = vunpack.c.l.b16 %v99
    %v139 = vunpack.c.l.b16 %v100
    %v140 = vunpack.c.l.b16 %v101
    %v141 = vunpack.c.l.b16 %v102
    %v142 = vunpack.c.l.b16 %v103
    %v143 = vunpack.c.l.b16 %v104
    %v144 = vunpack.c.l.b16 %v105
    %v145 = vunpack.c.l.b16 %v106
    %v146 = vunpack.c.l.b16 %v107
    %v147 = vunpack.c.l.b16 %v108
    %v148 = vpack.c.b16 %v133, %v132
    %v149 = vpack.c.b16 %v135, %v134
    %v150 = vpack.c.b16 %v137, %v136
    %v151 = vpack.c.b16 %v139, %v138
    %v152 = vpack.c.b16 %v141, %v140
    %v153 = vpack.c.b16 %v143, %v142
    %v154 = vpack.c.b16 %v145, %v144
    %v155 = vpack.c.b16 %v147, %v146
    %164 = vmatprep.subr.bf16.mxu0 0
    %165 = vmatpush1.bf16.msra.mxu0 %v155
    %166 = vmatprep.subr.bf16.mxu0 0
    %167 = vmatpush1.bf16.msra.mxu0 %v154
    %168 = vmatprep.subr.bf16.mxu0 0
    %169 = vmatpush1.bf16.msra.mxu0 %v153
    %170 = vmatprep.subr.bf16.mxu0 0
    %171 = vmatpush1.bf16.msra.mxu0 %v152
    %172 = vmatprep.subr.bf16.mxu0 0
    %173 = vmatpush1.bf16.msra.mxu0 %v151
    %174 = vmatprep.subr.bf16.mxu0 0
    %175 = vmatpush1.bf16.msra.mxu0 %v150
    %176 = vmatprep.subr.bf16.mxu0 0
    %177 = vmatpush1.bf16.msra.mxu0 %v149
    %178 = vmatprep.subr.bf16.mxu0 0
    %179 = vmatpush1.bf16.msra.mxu0 %v148
    %180 = vmatprep.subr.bf16.mxu0 0
    %181 = vmatpush2.bf16.msra.mxu0 0
    %182 = vmatprep.subr.bf16.mxu0 0
    %183 = vmatpush2.bf16.msra.mxu0 0
    %184 = vmatprep.subr.bf16.mxu0 0
    %185 = vmatpush2.bf16.msra.mxu0 0
    %186 = vmatprep.subr.bf16.mxu0 0
    %187 = vmatpush2.bf16.msra.mxu0 0
    %188 = vmatprep.subr.bf16.mxu0 0
    %189 = vmatpush2.bf16.msra.mxu0 0
    %190 = vmatprep.subr.bf16.mxu0 0
    %191 = vmatpush2.bf16.msra.mxu0 0
    %192 = vmatprep.subr.bf16.mxu0 0
    %193 = vmatpush2.bf16.msra.mxu0 0
    %194 = vmatprep.subr.bf16.mxu0 0
    %195 = vmatpush2.bf16.msra.mxu0 0
    %196 = vmatprep.mubr.bf16.mxu0 0
    %197 = vmatmul.mubr.bf16.gmra.mxu0 %v92
    %v198 = vpop.f32.mrf.mxu0
    %v199 = vadd.f32 %v114, %v198
    %v200 = vpop.f32.mrf.mxu0
    %v201 = vpop.f32.mrf.mxu0
    %v202 = vpop.f32.mrf.mxu0
    %203 = vdwg.mxu0
    %v204 = vmax.f32 %v199, 0.0
    %s205 = scalar_lea.vmem %s3, 1
    %v206 = vld [vmem:[%s205] sm:$0x1]
    %s207 = scalar_lea.vmem %s4, 1
    %v208 = vld [vmem:[%s207] sm:$0x1]
    %v209 = vrot.slane %v204, 4
    %v210 = vadd.f32 %v204, %v209
    %v211 = vrot.slane %v210, 2
    %v212 = vadd.f32 %v210, %v211
    %v213 = vrot.slane %v212, 1
    %v214 = vadd.f32 %v212, %v213
    %v215 = vmul.f32 %v214, 0.125
    %v216 = vsub.f32 %v204, %v215
    %v217 = vmul.f32 %v216, %v216
    %v218 = vrot.slane %v217, 4
    %v219 = vadd.f32 %v217, %v218
    %v220 = vrot.slane %v219, 2
    %v221 = vadd.f32 %v219, %v220
    %v222 = vrot.slane %v221, 1
    %v223 = vadd.f32 %v221, %v222
    %v224 = vmul.f32 %v223, 0.125
    %v225 = vadd.f32 %v224, 1e-05
    %v226 = vrsqrt.pop %v225
    %v227 = vmul.f32 %v206, %v226
    %v229 = vlaneseq
    %v230 = vshrl.u32 %v229, 7
    %v231 = vsub.s32 0, %v230
    %v232 = vrot.slane %v227, %v231
    %v234 = vmul.f32 %v216, %v232
    %v236 = vlaneseq
    %v237 = vshrl.u32 %v236, 7
    %v238 = vsub.s32 0, %v237
    %v239 = vrot.slane %v208, %v238
    %v241 = vadd.f32 %v234, %v239
    %v242 = vpack.c.bf16 %v241, %v241
    %s243 = scalar_lea.vmem [#allocation2], 64
    %v244 = vld [vmem:[%s243] sm:$0xf]
    %v245 = vld [vmem:[%s243 + $0x4] sm:$0xf]
    %v246 = vld [vmem:[%s243 + $0x8] sm:$0xf]
    %v247 = vld [vmem:[%s243 + $0xc] sm:$0xf]
    %v248 = vld [vmem:[%s243 + $0x10] sm:$0xf]
    %v249 = vld [vmem:[%s243 + $0x14] sm:$0xf]
    %v250 = vld [vmem:[%s243 + $0x18] sm:$0xf]
    %v251 = vld [vmem:[%s243 + $0x1c] sm:$0xf]
    %v252 = vld [vmem:[%s243 + $0x20] sm:$0xf]
    %v253 = vld [vmem:[%s243 + $0x24] sm:$0xf]
    %v254 = vld [vmem:[%s243 + $0x28] sm:$0xf]
    %v255 = vld [vmem:[%s243 + $0x2c] sm:$0xf]
    %v256 = vld [vmem:[%s243 + $0x30] sm:$0xf]
    %v257 = vld [vmem:[%s243 + $0x34] sm:$0xf]
    %v258 = vld [vmem:[%s243 + $0x38] sm:$0xf]
    %v259 = vld [vmem:[%s243 + $0x3c] sm:$0xf]
    %s260 = scalar_lea.vmem %s2, 1
    %v261 = vld [vmem:[%s260] sm:$0x1]
    %v263 = vlaneseq
    %v264 = vshrl.u32 %v263, 7
    %v265 = vsub.s32 0, %v264
    %v266 = vrot.slane %v261, %v265
    %v284 = vunpack.c.l.b16 %v244
    %v285 = vunpack.c.l.b16 %v245
    %v286 = vunpack.c.l.b16 %v246
    %v287 = vunpack.c.l.b16 %v247
    %v288 = vunpack.c.l.b16 %v248
    %v289 = vunpack.c.l.b16 %v249
    %v290 = vunpack.c.l.b16 %v250
    %v291 = vunpack.c.l.b16 %v251
    %v292 = vunpack.c.l.b16 %v252
    %v293 = vunpack.c.l.b16 %v253
    %v294 = vunpack.c.l.b16 %v254
    %v295 = vunpack.c.l.b16 %v255
    %v296 = vunpack.c.l.b16 %v256
    %v297 = vunpack.c.l.b16 %v257
    %v298 = vunpack.c.l.b16 %v258
    %v299 = vunpack.c.l.b16 %v259
    %v300 = vpack.c.b16 %v285, %v284
    %v301 = vpack.c.b16 %v287, %v286
    %v302 = vpack.c.b16 %v289, %v288
    %v303 = vpack.c.b16 %v291, %v290
    %v304 = vpack.c.b16 %v293, %v292
    %v305 = vpack.c.b16 %v295, %v294
    %v306 = vpack.c.b16 %v297, %v296
    %v307 = vpack.c.b16 %v299, %v298
    %316 = vmatprep.subr.bf16.mxu0 0
    %317 = vmatpush1.bf16.msra.mxu0 %v307
    %318 = vmatprep.subr.bf16.mxu0 0
    %319 = vmatpush1.bf16.msra.mxu0 %v306
    %320 = vmatprep.subr.bf16.mxu0 0
    %321 = vmatpush1.bf16.msra.mxu0 %v305
    %322 = vmatprep.subr.bf16.mxu0 0
    %323 = vmatpush1.bf16.msra.mxu0 %v304
    %324 = vmatprep.subr.bf16.mxu0 0
    %325 = vmatpush1.bf16.msra.mxu0 %v303
    %326 = vmatprep.subr.bf16.mxu0 0
    %327 = vmatpush1.bf16.msra.mxu0 %v302
    %328 = vmatprep.subr.bf16.mxu0 0
    %329 = vmatpush1.bf16.msra.mxu0 %v301
    %330 = vmatprep.subr.bf16.mxu0 0
    %331 = vmatpush1.bf16.msra.mxu0 %v300
    %332 = vmatprep.subr.bf16.mxu0 0
    %333 = vmatpush2.bf16.msra.mxu0 0
    %334 = vmatprep.subr.bf16.mxu0 0
    %335 = vmatpush2.bf16.msra.mxu0 0
    %336 = vmatprep.subr.bf16.mxu0 0
    %337 = vmatpush2.bf16.msra.mxu0 0
    %338 = vmatprep.subr.bf16.mxu0 0
    %339 = vmatpush2.bf16.msra.mxu0 0
    %340 = vmatprep.subr.bf16.mxu0 0
    %341 = vmatpush2.bf16.msra.mxu0 0
    %342 = vmatprep.subr.bf16.mxu0 0
    %343 = vmatpush2.bf16.msra.mxu0 0
    %344 = vmatprep.subr.bf16.mxu0 0
    %345 = vmatpush2.bf16.msra.mxu0 0
    %346 = vmatprep.subr.bf16.mxu0 0
    %347 = vmatpush2.bf16.msra.mxu0 0
    %348 = vmatprep.mubr.bf16.mxu0 0
    %349 = vmatmul.mubr.bf16.gmra.mxu0 %v242
    %v350 = vpop.f32.mrf.mxu0
    %v351 = vadd.f32 %v266, %v350
    %v352 = vpop.f32.mrf.mxu0
    %v353 = vpop.f32.mrf.mxu0
    %v354 = vpop.f32.mrf.mxu0
    %355 = vdwg.mxu0
    %v356 = vmax.f32 %v351, 0.0
    %v357 = vld [vmem:[#allocation5] sm:$0xf]
    %v358 = vld [vmem:[#allocation5 + $0x4] sm:$0xf]
    %v359 = vld [vmem:[#allocation5 + $0x8] sm:$0xf]
    %v360 = vld [vmem:[#allocation5 + $0xc] sm:$0xf]
    %v361 = vld [vmem:[#allocation5 + $0x10] sm:$0xf]
    %v362 = vld [vmem:[#allocation5 + $0x14] sm:$0xf]
    %v363 = vld [vmem:[#allocation5 + $0x18] sm:$0xf]
    %v364 = vld [vmem:[#allocation5 + $0x1c] sm:$0xf]
    %v365 = vld [vmem:[#allocation5 + $0x20] sm:$0xf]
    %v366 = vld [vmem:[#allocation5 + $0x24] sm:$0xf]
    %v367 = vld [vmem:[#allocation5 + $0x28] sm:$0xf]
    %v368 = vld [vmem:[#allocation5 + $0x2c] sm:$0xf]
    %v369 = vld [vmem:[#allocation5 + $0x30] sm:$0xf]
    %v370 = vld [vmem:[#allocation5 + $0x34] sm:$0xf]
    %v371 = vld [vmem:[#allocation5 + $0x38] sm:$0xf]
    %v372 = vld [vmem:[#allocation5 + $0x3c] sm:$0xf]
    %v373 = vld [vmem:[%s6] sm:$0x1]
    %v374 = vpack.c.bf16 %v356, %v356
    %v376 = vlaneseq
    %v377 = vshrl.u32 %v376, 7
    %v378 = vsub.s32 0, %v377
    %v379 = vrot.slane %v373, %v378
    %v397 = vunpack.c.l.b16 %v357
    %v398 = vunpack.c.l.b16 %v358
    %v399 = vunpack.c.l.b16 %v359
    %v400 = vunpack.c.l.b16 %v360
    %v401 = vunpack.c.l.b16 %v361
    %v402 = vunpack.c.l.b16 %v362
    %v403 = vunpack.c.l.b16 %v363
    %v404 = vunpack.c.l.b16 %v364
    %v405 = vunpack.c.l.b16 %v365
    %v406 = vunpack.c.l.b16 %v366
    %v407 = vunpack.c.l.b16 %v367
    %v408 = vunpack.c.l.b16 %v368
    %v409 = vunpack.c.l.b16 %v369
    %v410 = vunpack.c.l.b16 %v370
    %v411 = vunpack.c.l.b16 %v371
    %v412 = vunpack.c.l.b16 %v372
    %v413 = vpack.c.b16 %v398, %v397
    %v414 = vpack.c.b16 %v400, %v399
    %v415 = vpack.c.b16 %v402, %v401
    %v416 = vpack.c.b16 %v404, %v403
    %v417 = vpack.c.b16 %v406, %v405
    %v418 = vpack.c.b16 %v408, %v407
    %v419 = vpack.c.b16 %v410, %v409
    %v420 = vpack.c.b16 %v412, %v411
    %429 = vmatprep.subr.bf16.mxu0 0
    %430 = vmatpush1.bf16.msra.mxu0 %v420
    %431 = vmatprep.subr.bf16.mxu0 0
    %432 = vmatpush1.bf16.msra.mxu0 %v419
    %433 = vmatprep.subr.bf16.mxu0 0
    %434 = vmatpush1.bf16.msra.mxu0 %v418
    %435 = vmatprep.subr.bf16.mxu0 0
    %436 = vmatpush1.bf16.msra.mxu0 %v417
    %437 = vmatprep.subr.bf16.mxu0 0
    %438 = vmatpush1.bf16.msra.mxu0 %v416
    %439 = vmatprep.subr.bf16.mxu0 0
    %440 = vmatpush1.bf16.msra.mxu0 %v415
    %441 = vmatprep.subr.bf16.mxu0 0
    %442 = vmatpush1.bf16.msra.mxu0 %v414
    %443 = vmatprep.subr.bf16.mxu0 0
    %444 = vmatpush1.bf16.msra.mxu0 %v413
    %445 = vmatprep.subr.bf16.mxu0 0
    %446 = vmatpush2.bf16.msra.mxu0 0
    %447 = vmatprep.subr.bf16.mxu0 0
    %448 = vmatpush2.bf16.msra.mxu0 0
    %449 = vmatprep.subr.bf16.mxu0 0
    %450 = vmatpush2.bf16.msra.mxu0 0
    %451 = vmatprep.subr.bf16.mxu0 0
    %452 = vmatpush2.bf16.msra.mxu0 0
    %453 = vmatprep.subr.bf16.mxu0 0
    %454 = vmatpush2.bf16.msra.mxu0 0
    %455 = vmatprep.subr.bf16.mxu0 0
    %456 = vmatpush2.bf16.msra.mxu0 0
    %457 = vmatprep.subr.bf16.mxu0 0
    %458 = vmatpush2.bf16.msra.mxu0 0
    %459 = vmatprep.subr.bf16.mxu0 0
    %460 = vmatpush2.bf16.msra.mxu0 0
    %461 = vmatprep.mubr.bf16.mxu0 0
    %462 = vmatmul.mubr.bf16.gmra.mxu0 %v374
    %v463 = vpop.f32.mrf.mxu0
    %v464 = vadd.f32 %v379, %v463
    %v465 = vpop.f32.mrf.mxu0
    %v466 = vpop.f32.mrf.mxu0
    %v467 = vpop.f32.mrf.mxu0
    %468 = vdwg.mxu0
    %469 = vmax.xlane.f32.xlu0 %v464
    %v470 = vpop.xlane.xlu0 %469
    %v471 = vsub.f32 %v464, %v470
    %v472 = vmul.f32 %v471, 1.442695
    %v473 = vpow.pop %v472
    %474 = vadd.xlane.f32.xlu0 %v473
    %v475 = vpop.xlane.xlu0 %474
    %v476 = vrcp.pop %v475
    %v477 = vmul.f32 %v473, %v476
    %478 = vst [vmem:[#allocation7] sm:$0xff] %v477
    // Predicated region
    $region38: #{_lambda_.1} parent=1 // pred_check
      _
    $region39: #{_lambda_.1} parent=1 // pred_check_branch
      %480 = sbr.rel (0) target = $region41
    $region40: #{_lambda_.1} parent=1 // pred_region
      %s482 = ssub.s32 128, 128
      %483 = vsyncadd [#allocation4], %s482
      %s485 = sshll.u32 [#allocation7], 4
      %s486 = int_to_ptr.vmem [resolvable:$true] %s485
      %488 = dma.vmem_to_hbm [thread:$0]  %s486, 128, %s7, [#allocation4]
    $region41: #{_lambda_.1} parent=1 // pred_fallthru
      _
    // Predicated region
    $region42: #{_lambda_.1} parent=1 // pred_check
      _
    $region43: #{_lambda_.1} parent=1 // pred_check_branch
      %490 = sbr.rel (0) target = $region45
    $region44: #{_lambda_.1} parent=1 // pred_region
      %491 = dma.done [#allocation4], 128
    $region45: #{_lambda_.1} parent=1 // pred_fallthru
      _
    %492 = vsyncpa [#allocation3], 1
    %493 = vsyncpa [#allocation6], 1
    %494 = vsyncpa [#allocation4], 1

</llo_original>
